<compile_context>
chip_gen: v7x
topology: tpu7x:2x2x1
jax: 0.10.0
libtpu: 0.0.40
codegen_flags: <defaults>
</compile_context>

<pallas_src>
import functools

import jax
import jax.numpy as jnp
from jax.experimental import pallas as pl
from jax.experimental.pallas import tpu as pltpu


def _round_up(a, m):
    return ((a + m - 1) // m) * m


def _cell_kernel(num_node, e, x_ref, *refs):
    """Producer-fused Cell forward over one row tile.

    refs = (wp_0..wp_{n-1}, bp_0..bp_{n-1}, wt, bt, o)
      wp_g : VMEM (e, (num_node-g)*e)  prob-folded weights for every consumer of
             producer g; consumer i>g sits at column offset (i-g-1)*e (zero blocks dropped)
      bp_g : VMEM (1, (num_node-g)*e)  matching prob-folded biases (f32)
      wt   : VMEM (num_node*e, e)      trans Linear weight, pre-transposed
      bt   : VMEM (1, e)               trans Linear bias (f32)
    """
    wp_refs = refs[:num_node]
    bp_refs = refs[num_node:2 * num_node]
    wt_ref = refs[2 * num_node]
    bt_ref = refs[2 * num_node + 1]
    o_ref = refs[2 * num_node + 2]

    dt = x_ref.dtype
    # chunks[i] accumulates node (i+1)'s output h_{i+1} in f32.
    chunks = [None] * num_node
    hp = x_ref[...]                                  # producer 0 activation (= x)
    for g in range(num_node):
        if g > 0:
            # Node g is finalized once producers 0..g-1 have contributed.
            hp = chunks[g - 1].astype(dt)
        # One fused dot per producer, over its real consumers only.
        r = jnp.dot(hp, wp_refs[g][...], preferred_element_type=jnp.float32)
        r = jnp.maximum(r + bp_refs[g][...], 0.0)     # (tn, (num_node-g)*e)
        # TODO(synk): split this dot so the critical chunk (j == 0, the only part the
        # next producer reads) is produced first -> narrower cross-iteration dependency.
        for j in range(num_node - g):
            c = g + j
            piece = r[:, j * e:(j + 1) * e]
            chunks[c] = piece if chunks[c] is None else chunks[c] + piece

    # concat(h[1:], -1) @ W_trans^T + b_trans as one K = num_node*e matmul.
    cat = jnp.concatenate(chunks, axis=-1).astype(dt)
    out = jnp.dot(cat, wt_ref[...], preferred_element_type=jnp.float32) + bt_ref[...]
    o_ref[...] = out.astype(o_ref.dtype)


def cell_forward(x, packed, *, tn=256, compute_dtype=None):
    b, s, e = x.shape
    num_node = packed["num_node"]
    ne = num_node * e
    n = b * s
    in_dt = x.dtype

    # bf16 matmul operands (f32 accumulation) recover the native MXU rate for f32 models.
    if compute_dtype is None:
        compute_dtype = jnp.bfloat16 if in_dt == jnp.float32 else in_dt
    cdt = jnp.dtype(compute_dtype)

    x2 = x.reshape(n, e).astype(cdt)

    # Row tile: multiple of the native sublane tile; no wrapper-side padding
    # (pl.cdiv grid + Pallas boundary masking handle a partial last tile).
    min_tile = 16 if (cdt.itemsize < 4 and n >= 16) else 8
    tn = max(min_tile, min(tn, _round_up(n, min_tile)))
    if pl.cdiv(n, tn) < 2 and n >= 2 * min_tile:
        # v7x megacore: keep >=2 grid steps so "parallel" shards across both TCs.
        tn = _round_up(pl.cdiv(n, 2), min_tile)
    grid = (pl.cdiv(n, tn),)

    wp = [w.astype(cdt) for w in packed["wp"]]       # matmul operands in compute dtype
    bp = list(packed["bp"])                          # f32 (added to f32 accumulators)
    wt = packed["wt"].astype(cdt)
    bt = packed["bt"]                                # f32 (1, e)

    # Weights are grid-invariant: constant index_map + Buffered(1) (no double buffer).
    def _w_spec(shape):
        return pl.BlockSpec(shape, lambda i: (0,) * len(shape),
                            pipeline_mode=pl.Buffered(1))

    in_specs = [pl.BlockSpec((tn, e), lambda i: (i, 0))]
    in_specs += [_w_spec(w.shape) for w in wp]
    in_specs += [_w_spec(bv.shape) for bv in bp]
    in_specs += [_w_spec(wt.shape), _w_spec(bt.shape)]

    kernel = functools.partial(_cell_kernel, num_node, e)

    # Honest scheduler hints (zero consumer blocks are no longer computed).
    prod_flops = 2 * n * e * e * (num_node * (num_node + 1) // 2)
    trans_flops = 2 * n * ne * e
    w_bytes = sum(int(w.size) * w.dtype.itemsize for w in wp) + int(wt.size) * wt.dtype.itemsize
    b_bytes = sum(int(bv.size) * 4 for bv in bp) + int(bt.size) * 4
    bytes_accessed = int(n * e * cdt.itemsize                # x read
                         + n * e * jnp.dtype(in_dt).itemsize  # out write
                         + w_bytes + b_bytes)

    # Realistic VMEM request: single-buffered weights + double-buffered x/out tiles
    # + live f32 accumulators, with headroom for Mosaic internal scratch.
    io_bytes = 2 * tn * e * cdt.itemsize + 2 * tn * e * jnp.dtype(in_dt).itemsize
    acc_bytes = 2 * tn * ne * 4
    vmem_need = w_bytes + b_bytes + io_bytes + acc_bytes
    vmem_limit = min(max(int(1.5 * vmem_need) + (4 << 20), 8 << 20), 100 << 20)
    # TODO(synk): for v7x (64 MiB/TC) with large isize, add a producer grid axis
    # (grid=(rows, num_node), wp block indexed by g, acc in pltpu.VMEM scratch,
    # trans matmul gated by pl.when(g == num_node-1)) so only ~2 producer weight
    # slices are resident instead of all num_node.

    out2 = pl.pallas_call(
        kernel,
        out_shape=jax.ShapeDtypeStruct((n, e), in_dt),
        grid=grid,
        in_specs=in_specs,
        out_specs=pl.BlockSpec((tn, e), lambda i: (i, 0)),
        compiler_params=pltpu.CompilerParams(
            dimension_semantics=("parallel",),
            vmem_limit_bytes=vmem_limit,
        ),
        cost_estimate=pl.CostEstimate(
            flops=prod_flops + trans_flops, transcendentals=0,
            bytes_accessed=bytes_accessed),
    )(x2, *wp, *bp, wt, bt)

    return out2.reshape(b, s, e)


# --------------------------------------------------------------------------------------
# Parameter construction (PyTorch-layout) + packing into the kernel's fused layout.
# --------------------------------------------------------------------------------------

def init_params(key, num_node, e):
    total_groups = num_node * (num_node + 1) // 2
    k1, k2, k3, k4, k5 = jax.random.split(key, 5)

    # GroupLinear per-group weight W[g] is (out, in) as in nn.Linear.
    w_groups = jax.random.normal(k1, (total_groups, e, e), jnp.float32) / jnp.sqrt(e)
    b_groups = jax.random.normal(k2, (total_groups, e), jnp.float32) * 0.02

    # Node.weight is nn.Parameter(torch.zeros(ni)) at init; use small random logits here
    # to exercise a trained-search state.  Softmax over the node's i inputs (padded).
    logits = jax.random.normal(k5, (num_node, num_node), jnp.float32) * 0.5
    rows = []
    for i in range(1, num_node + 1):
        p = jax.nn.softmax(logits[i - 1, :i])
        rows.append(jnp.pad(p, (0, num_node - i)))
    probs = jnp.stack(rows)                                   # (num_node, num_node)

    # trans = Linear(isize*num_node, isize, bias=enable_prev_ln_bias_default)
    # TODO(synk): enable_prev_ln_bias_default is defined outside this module; bias=True assumed.
    w_trans = jax.random.normal(k3, (e, num_node * e), jnp.float32) / jnp.sqrt(num_node * e)
    b_trans = jax.random.normal(k4, (e,), jnp.float32) * 0.02

    return dict(num_node=num_node, w_groups=w_groups, b_groups=b_groups,
                probs=probs, w_trans=w_trans, b_trans=b_trans)


def pack_params(params):
    """Fold softmax probs into group weights/biases, pack producer-major, drop zero blocks."""
    num_node = params["num_node"]
    e = params["w_groups"].shape[-1]
    probs = params["probs"]

    # Prob folding relies on p > 0 (p*ReLU(z) == ReLU(p*z)).  Softmax guarantees it;
    # discretized / zeroed edges after search would not.
    min_used = min(float(probs[i - 1, g]) for i in range(1, num_node + 1) for g in range(i))
    if min_used <= 0.0:
        raise ValueError("pack_params: mixing weights must be strictly positive to fold into ReLU")

    wp_list, bp_list = [], []
    for g in range(num_node):                        # producer g
        width = (num_node - g) * e
        wpg = jnp.zeros((e, width), jnp.float32)
        bpg = jnp.zeros((1, width), jnp.float32)
        for i in range(g + 1, num_node + 1):         # consumer node i (only i > g kept)
            goff = i * (i - 1) // 2                  # first group index of node i
            p = probs[i - 1, g]
            w = params["w_groups"][goff + g]         # (out, in)
            bias = params["b_groups"][goff + g]      # (out,)
            col = (i - g - 1) * e
            wpg = wpg.at[:, col:col + e].set(p * w.T)
            bpg = bpg.at[0, col:col + e].set(p * bias)
        wp_list.append(wpg)
        bp_list.append(bpg)

    return dict(num_node=num_node, wp=tuple(wp_list), bp=tuple(bp_list),
                wt=params["w_trans"].T,                      # (num_node*e, e)
                bt=params["b_trans"].reshape(1, -1))


def cell_reference(x, params):
    """Pure-JAX reference mirroring the PyTorch training-mode forward (unfused)."""
    num_node = params["num_node"]
    h = [x]
    g_off = 0
    for i in range(1, num_node + 1):
        acc = 0.0
        for g in range(i):
            w = params["w_groups"][g_off + g]
            bias = params["b_groups"][g_off + g]
            y = jax.nn.relu(h[g] @ w.T + bias)
            acc = acc + params["probs"][i - 1, g] * y
        h.append(acc)
        g_off += i
    cat = jnp.concatenate(h[1:], axis=-1)
    return cat @ params["w_trans"].T + params["b_trans"]


if __name__ == "__main__":
    B, S, E = 2, 8, 32      # batch=2, seq=8, isize=32
    NUM_NODE = 3

    key = jax.random.PRNGKey(0)
    kx, kp = jax.random.split(key)
    x = jax.random.normal(kx, (B, S, E), jnp.float32)
    params = init_params(kp, NUM_NODE, E)
    packed = pack_params(params)

    ref = jax.block_until_ready(cell_reference(x, params))

    # Exactness check with f32 matmul operands.
    out_f32 = jax.block_until_ready(cell_forward(x, packed, compute_dtype=jnp.float32))
    assert out_f32.shape == (B, S, E)
    assert jnp.allclose(out_f32, ref, atol=1e-4, rtol=1e-4), "f32-path mismatch vs JAX reference"

    # Default fast path: bf16 matmul operands, f32 accumulation (looser tolerance for
    # bf16 operand rounding across the node chain).
    out = jax.block_until_ready(cell_forward(x, packed))
    assert out.shape == (B, S, E)
    assert jnp.allclose(out, ref, atol=5e-2, rtol=5e-2), "bf16-path mismatch vs JAX reference"

    print("KERNEL_OK")
</pallas_src>

<mosaic_0001>
module attributes {stable_mosaic.version = 11 : i64} {
  func.func @_cell_kernel(%arg0: i32, %arg1: memref<8x32xf32, #tpu.memory_space<vmem>>, %arg2: memref<32x96xf32, #tpu.memory_space<vmem>>, %arg3: memref<32x64xf32, #tpu.memory_space<vmem>>, %arg4: memref<32x32xf32, #tpu.memory_space<vmem>>, %arg5: memref<1x96xf32, #tpu.memory_space<vmem>>, %arg6: memref<1x64xf32, #tpu.memory_space<vmem>>, %arg7: memref<1x32xf32, #tpu.memory_space<vmem>>, %arg8: memref<96x32xf32, #tpu.memory_space<vmem>>, %arg9: memref<1x32xf32, #tpu.memory_space<vmem>>, %arg10: memref<8x32xf32, #tpu.memory_space<vmem>>) attributes {dimension_semantics = [#tpu.dimension_semantics<parallel>], iteration_bounds = array<i64: 2>, scalar_prefetch = 0 : i64, scratch_operands = 0 : i64, tpu.core_type = #tpu.core_type<tc>, window_params = [{transform_indices = @transform_0, window_bounds = array<i64: 8, 32>}, {pipeline_mode = #tpu.pipeline_mode<synchronous>, transform_indices = @transform_1, window_bounds = array<i64: 32, 96>}, {pipeline_mode = #tpu.pipeline_mode<synchronous>, transform_indices = @transform_2, window_bounds = array<i64: 32, 64>}, {pipeline_mode = #tpu.pipeline_mode<synchronous>, transform_indices = @transform_3, window_bounds = array<i64: 32, 32>}, {pipeline_mode = #tpu.pipeline_mode<synchronous>, transform_indices = @transform_4, window_bounds = array<i64: 1, 96>}, {pipeline_mode = #tpu.pipeline_mode<synchronous>, transform_indices = @transform_5, window_bounds = array<i64: 1, 64>}, {pipeline_mode = #tpu.pipeline_mode<synchronous>, transform_indices = @transform_6, window_bounds = array<i64: 1, 32>}, {pipeline_mode = #tpu.pipeline_mode<synchronous>, transform_indices = @transform_7, window_bounds = array<i64: 96, 32>}, {pipeline_mode = #tpu.pipeline_mode<synchronous>, transform_indices = @transform_8, window_bounds = array<i64: 1, 32>}, {transform_indices = @transform_9, window_bounds = array<i64: 8, 32>}]} {
    %c0 = arith.constant 0 : index
    %c0_0 = arith.constant 0 : index
    %0 = vector.load %arg1[%c0, %c0_0] : memref<8x32xf32, #tpu.memory_space<vmem>>, vector<8x32xf32>
    %c0_1 = arith.constant 0 : index
    %c0_2 = arith.constant 0 : index
    %1 = vector.load %arg2[%c0_1, %c0_2] : memref<32x96xf32, #tpu.memory_space<vmem>>, vector<32x96xf32>
    %cst = arith.constant dense<0.000000e+00> : vector<8x96xf32>
    %2 = tpu.matmul %0, %1, %cst {dimension_numbers = #tpu.dot_dimension_numbers<[1], [0], [0], [1], [0, 0, 1, 1], [], []>} : vector<8x32xf32>, vector<32x96xf32>, vector<8x96xf32> -> vector<8x96xf32>
    %c0_3 = arith.constant 0 : index
    %c0_4 = arith.constant 0 : index
    %3 = vector.load %arg5[%c0_3, %c0_4] : memref<1x96xf32, #tpu.memory_space<vmem>>, vector<1x96xf32>
    %4 = vector.broadcast %3 : vector<1x96xf32> to vector<8x96xf32>
    %5 = arith.addf %2, %4 : vector<8x96xf32>
    %cst_5 = arith.constant 0.000000e+00 : f32
    %6 = vector.broadcast %cst_5 : f32 to vector<8x96xf32>
    %7 = arith.maximumf %5, %6 : vector<8x96xf32>
    %8 = vector.extract_strided_slice %7 {offsets = [0, 0], sizes = [8, 32], strides = [1, 1]} : vector<8x96xf32> to vector<8x32xf32>
    %9 = vector.extract_strided_slice %7 {offsets = [0, 32], sizes = [8, 32], strides = [1, 1]} : vector<8x96xf32> to vector<8x32xf32>
    %10 = vector.extract_strided_slice %7 {offsets = [0, 64], sizes = [8, 32], strides = [1, 1]} : vector<8x96xf32> to vector<8x32xf32>
    %c0_6 = arith.constant 0 : index
    %c0_7 = arith.constant 0 : index
    %11 = vector.load %arg3[%c0_6, %c0_7] : memref<32x64xf32, #tpu.memory_space<vmem>>, vector<32x64xf32>
    %cst_8 = arith.constant dense<0.000000e+00> : vector<8x64xf32>
    %12 = tpu.matmul %8, %11, %cst_8 {dimension_numbers = #tpu.dot_dimension_numbers<[1], [0], [0], [1], [0, 0, 1, 1], [], []>} : vector<8x32xf32>, vector<32x64xf32>, vector<8x64xf32> -> vector<8x64xf32>
    %c0_9 = arith.constant 0 : index
    %c0_10 = arith.constant 0 : index
    %13 = vector.load %arg6[%c0_9, %c0_10] : memref<1x64xf32, #tpu.memory_space<vmem>>, vector<1x64xf32>
    %14 = vector.broadcast %13 : vector<1x64xf32> to vector<8x64xf32>
    %15 = arith.addf %12, %14 : vector<8x64xf32>
    %cst_11 = arith.constant 0.000000e+00 : f32
    %16 = vector.broadcast %cst_11 : f32 to vector<8x64xf32>
    %17 = arith.maximumf %15, %16 : vector<8x64xf32>
    %18 = vector.extract_strided_slice %17 {offsets = [0, 0], sizes = [8, 32], strides = [1, 1]} : vector<8x64xf32> to vector<8x32xf32>
    %19 = arith.addf %9, %18 : vector<8x32xf32>
    %20 = vector.extract_strided_slice %17 {offsets = [0, 32], sizes = [8, 32], strides = [1, 1]} : vector<8x64xf32> to vector<8x32xf32>
    %21 = arith.addf %10, %20 : vector<8x32xf32>
    %c0_12 = arith.constant 0 : index
    %c0_13 = arith.constant 0 : index
    %22 = vector.load %arg4[%c0_12, %c0_13] : memref<32x32xf32, #tpu.memory_space<vmem>>, vector<32x32xf32>
    %cst_14 = arith.constant dense<0.000000e+00> : vector<8x32xf32>
    %23 = tpu.matmul %19, %22, %cst_14 {dimension_numbers = #tpu.dot_dimension_numbers<[1], [0], [0], [1], [0, 0, 1, 1], [], []>} : vector<8x32xf32>, vector<32x32xf32>, vector<8x32xf32> -> vector<8x32xf32>
    %c0_15 = arith.constant 0 : index
    %c0_16 = arith.constant 0 : index
    %24 = vector.load %arg7[%c0_15, %c0_16] : memref<1x32xf32, #tpu.memory_space<vmem>>, vector<1x32xf32>
    %25 = vector.broadcast %24 : vector<1x32xf32> to vector<8x32xf32>
    %26 = arith.addf %23, %25 : vector<8x32xf32>
    %cst_17 = arith.constant 0.000000e+00 : f32
    %27 = vector.broadcast %cst_17 : f32 to vector<8x32xf32>
    %28 = arith.maximumf %26, %27 : vector<8x32xf32>
    %29 = arith.addf %21, %28 : vector<8x32xf32>
    %30 = tpu.concatenate %8, %19, %29 in 1 : vector<8x32xf32>, vector<8x32xf32>, vector<8x32xf32> -> vector<8x96xf32>
    %c0_18 = arith.constant 0 : index
    %c0_19 = arith.constant 0 : index
    %31 = vector.load %arg8[%c0_18, %c0_19] : memref<96x32xf32, #tpu.memory_space<vmem>>, vector<96x32xf32>
    %cst_20 = arith.constant dense<0.000000e+00> : vector<8x32xf32>
    %32 = tpu.matmul %30, %31, %cst_20 {dimension_numbers = #tpu.dot_dimension_numbers<[1], [0], [0], [1], [0, 0, 1, 1], [], []>} : vector<8x96xf32>, vector<96x32xf32>, vector<8x32xf32> -> vector<8x32xf32>
    %c0_21 = arith.constant 0 : index
    %c0_22 = arith.constant 0 : index
    %33 = vector.load %arg9[%c0_21, %c0_22] : memref<1x32xf32, #tpu.memory_space<vmem>>, vector<1x32xf32>
    %34 = vector.broadcast %33 : vector<1x32xf32> to vector<8x32xf32>
    %35 = arith.addf %32, %34 : vector<8x32xf32>
    %c0_23 = arith.constant 0 : index
    %c0_24 = arith.constant 0 : index
    %36 = vector.load %arg10[%c0_23, %c0_24] : memref<8x32xf32, #tpu.memory_space<vmem>>, vector<8x32xf32>
    tpu.vector_store %arg10[%c0_23, %c0_24], %35 {strides = array<i32>} : memref<8x32xf32, #tpu.memory_space<vmem>>, vector<8x32xf32>,
    return
  }
  func.func @transform_0(%arg0: i32) -> (i32, i32) {
    %c0_i32 = arith.constant 0 : i32
    %c0_i32_0 = arith.constant 0 : i32
    return %arg0, %c0_i32 : i32, i32
  }
  func.func @transform_1(%arg0: i32) -> (i32, i32) {
    %c0_i32 = arith.constant 0 : i32
    %c0_i32_0 = arith.constant 0 : i32
    %c0_i32_1 = arith.constant 0 : i32
    return %c0_i32, %c0_i32_0 : i32, i32
  }
  func.func @transform_2(%arg0: i32) -> (i32, i32) {
    %c0_i32 = arith.constant 0 : i32
    %c0_i32_0 = arith.constant 0 : i32
    %c0_i32_1 = arith.constant 0 : i32
    return %c0_i32, %c0_i32_0 : i32, i32
  }
  func.func @transform_3(%arg0: i32) -> (i32, i32) {
    %c0_i32 = arith.constant 0 : i32
    %c0_i32_0 = arith.constant 0 : i32
    %c0_i32_1 = arith.constant 0 : i32
    return %c0_i32, %c0_i32_0 : i32, i32
  }
  func.func @transform_4(%arg0: i32) -> (i32, i32) {
    %c0_i32 = arith.constant 0 : i32
    %c0_i32_0 = arith.constant 0 : i32
    %c0_i32_1 = arith.constant 0 : i32
    return %c0_i32, %c0_i32_0 : i32, i32
  }
  func.func @transform_5(%arg0: i32) -> (i32, i32) {
    %c0_i32 = arith.constant 0 : i32
    %c0_i32_0 = arith.constant 0 : i32
    %c0_i32_1 = arith.constant 0 : i32
    return %c0_i32, %c0_i32_0 : i32, i32
  }
  func.func @transform_6(%arg0: i32) -> (i32, i32) {
    %c0_i32 = arith.constant 0 : i32
    %c0_i32_0 = arith.constant 0 : i32
    %c0_i32_1 = arith.constant 0 : i32
    return %c0_i32, %c0_i32_0 : i32, i32
  }
  func.func @transform_7(%arg0: i32) -> (i32, i32) {
    %c0_i32 = arith.constant 0 : i32
    %c0_i32_0 = arith.constant 0 : i32
    %c0_i32_1 = arith.constant 0 : i32
    return %c0_i32, %c0_i32_0 : i32, i32
  }
  func.func @transform_8(%arg0: i32) -> (i32, i32) {
    %c0_i32 = arith.constant 0 : i32
    %c0_i32_0 = arith.constant 0 : i32
    %c0_i32_1 = arith.constant 0 : i32
    return %c0_i32, %c0_i32_0 : i32, i32
  }
  func.func @transform_9(%arg0: i32) -> (i32, i32) {
    %c0_i32 = arith.constant 0 : i32
    %c0_i32_0 = arith.constant 0 : i32
    return %arg0, %c0_i32 : i32, i32
  }
}

</mosaic_0001>

<llo_original>
// kernel: tpu_custom_call.1
$region0: #{tpu_custom_call.1}
  #allocation0 [shape = 'u32[]', space=smem, size = 0x4, offset = 0x4, fixed_abs, tag = 'smem constant byte address 0x4 - core index']
  #allocation1 [shape = 'u32[144,128]{1,0:T(1,128)}', space=vmem, size = 0x12000, scoped, tag = 'internal scratch']
  %s0 = inlined_call_operand.vmem [shape: f32[16,32], index: 0, kind: input, shape index: {}]
  %s1 = inlined_call_operand.vmem [shape: f32[32,96], index: 1, kind: input, shape index: {}]
  %s2 = inlined_call_operand.vmem [shape: f32[32,64], index: 2, kind: input, shape index: {}]
  %s3 = inlined_call_operand.vmem [shape: f32[32,32], index: 3, kind: input, shape index: {}]
  %s4 = inlined_call_operand.vmem [shape: f32[1,96], index: 4, kind: input, shape index: {}]
  %s5 = inlined_call_operand.vmem [shape: f32[1,64], index: 5, kind: input, shape index: {}]
  %s6 = inlined_call_operand.vmem [shape: f32[1,32], index: 6, kind: input, shape index: {}]
  %s7 = inlined_call_operand.vmem [shape: f32[96,32], index: 7, kind: input, shape index: {}]
  %s8 = inlined_call_operand.vmem [shape: f32[1,32], index: 8, kind: input, shape index: {}]
  %s9 = inlined_call_operand.hbm [shape: f32[16,32], index: 9, kind: output, shape index: {}]
  %s10 = sld [smem:[#allocation0]]
  $region69: #{tpu_custom_call.1} parent=0
    _
  %s12 = ssub.s32 1, %s10
  %s13 = scalar_select 0, %s12, %s10
  $region1: #{tpu_custom_call.1} parent=0
    #allocation2 [shape = 'u8[8192]{0}', space=vmem, size = 0x2000, scoped, tag = 'output window, operand 0']
    #allocation3 [shape = 's32[2]{0}', space=sflag, size = 0x8, scoped, tag = 'scoped memory for tpu_custom_call.1']
    %14 = vsyncpa [#allocation3], 0
    %s15 = scalar_lea.sflag [#allocation3], 1
    %16 = vsyncpa %s15, 0
    loop: start=0, step=1, limit=4
    $region2: #{tpu_custom_call.1} parent=1 // loop_pre_header
      _
    $region3: #{tpu_custom_call.1} parent=1 // loop_header
      %s18 = sphi 0, %s22
      %p19 = scmp.ge.s32.totalorder %s18, 4
      %s28 = sphi 0, %s30
      %s31 = sphi 0, %s28
      %s32 = sphi 0, %s31
      %s48 = sphi 0, %s32
      %s52 = sphi 0, %s52
      %s54 = sphi 0, %s52
      %s55 = sphi 0, %s54
      %s69 = sphi 0, %s55
      %s73 = sphi 0, %s73
      %s75 = sphi 0, %s73
      %s76 = sphi 0, %s75
      %s90 = sphi 0, %s76
      %s94 = sphi 0, %s94
      %s96 = sphi 0, %s94
      %s97 = sphi 0, %s96
      %s111 = sphi 0, %s97
      %s115 = sphi 0, %s115
      %s117 = sphi 0, %s115
      %s118 = sphi 0, %s117
      %s132 = sphi 0, %s118
      %s136 = sphi 0, %s136
      %s138 = sphi 0, %s136
      %s139 = sphi 0, %s138
      %s153 = sphi 0, %s139
      %s157 = sphi 0, %s157
      %s159 = sphi 0, %s157
      %s160 = sphi 0, %s159
      %s174 = sphi 0, %s160
      %s178 = sphi 0, %s178
      %s180 = sphi 0, %s178
      %s181 = sphi 0, %s180
      %s195 = sphi 0, %s181
      %s199 = sphi 0, %s199
      %s201 = sphi 0, %s199
      %s202 = sphi 0, %s201
      %s216 = sphi 0, %s202
      %s222 = sphi 0, %s224
      %s225 = sphi 0, %s222
      %s226 = sphi 0, %s225
      %s242 = sphi 0, %s226
    $region4: #{tpu_custom_call.1} parent=1 // loop_header_branch
      %21 = sbr.rel (%p19) target = $region8
    $region5: #{tpu_custom_call.1} parent=1 // loop_body
      %s23 = ssub.s32 %s18, 1
      %s24 = ssub.s32 %s18, 2
      %s25 = sadd.s32 %s18, 1
      %s26 = ssub.s32 %s18, %s25
      %p27 = scmp.eq.s32.totalorder %s26, 0
      %s29 = sadd.s32 %s28, 1
      %s30 = scalar_select %p27, %s28, %s29
      %p33 = pneg %p27
      %p34 = scmp.eq.s32.totalorder %s18, 1
      %p35 = por %p33, %p34
      %p36 = scmp.ne.s32.totalorder %s28, %s31
      %p37 = scmp.eq.s32.totalorder %s18, 0
      %p38 = por %p36, %p37
      %p39 = scmp.ne.s32.totalorder %s28, %s31
      %p40 = scmp.eq.s32.totalorder %s23, 1
      %p41 = por %p39, %p40
      %p42 = scmp.ne.s32.totalorder %s31, %s32
      %p43 = scmp.eq.s32.totalorder %s23, 0
      %p44 = por %p42, %p43
      %p45 = scmp.ne.s32.totalorder %s31, %s32
      %p46 = scmp.eq.s32.totalorder %s24, 1
      %p47 = por %p45, %p46
      %p49 = scmp.ne.s32.totalorder %s32, %s48
      %p50 = scmp.eq.s32.totalorder %s24, 0
      %p51 = por %p49, %p50
      %s53 = sadd.s32 %s52, 1
      %p56 = scmp.eq.s32.totalorder %s18, 1
      %p57 = scmp.ne.s32.totalorder %s52, %s54
      %p58 = scmp.eq.s32.totalorder %s18, 0
      %p59 = por %p57, %p58
      %p60 = scmp.ne.s32.totalorder %s52, %s54
      %p61 = scmp.eq.s32.totalorder %s23, 1
      %p62 = por %p60, %p61
      %p63 = scmp.ne.s32.totalorder %s54, %s55
      %p64 = scmp.eq.s32.totalorder %s23, 0
      %p65 = por %p63, %p64
      %p66 = scmp.ne.s32.totalorder %s54, %s55
      %p67 = scmp.eq.s32.totalorder %s24, 1
      %p68 = por %p66, %p67
      %p70 = scmp.ne.s32.totalorder %s55, %s69
      %p71 = scmp.eq.s32.totalorder %s24, 0
      %p72 = por %p70, %p71
      %s74 = sadd.s32 %s73, 1
      %p77 = scmp.eq.s32.totalorder %s18, 1
      %p78 = scmp.ne.s32.totalorder %s73, %s75
      %p79 = scmp.eq.s32.totalorder %s18, 0
      %p80 = por %p78, %p79
      %p81 = scmp.ne.s32.totalorder %s73, %s75
      %p82 = scmp.eq.s32.totalorder %s23, 1
      %p83 = por %p81, %p82
      %p84 = scmp.ne.s32.totalorder %s75, %s76
      %p85 = scmp.eq.s32.totalorder %s23, 0
      %p86 = por %p84, %p85
      %p87 = scmp.ne.s32.totalorder %s75, %s76
      %p88 = scmp.eq.s32.totalorder %s24, 1
      %p89 = por %p87, %p88
      %p91 = scmp.ne.s32.totalorder %s76, %s90
      %p92 = scmp.eq.s32.totalorder %s24, 0
      %p93 = por %p91, %p92
      %s95 = sadd.s32 %s94, 1
      %p98 = scmp.eq.s32.totalorder %s18, 1
      %p99 = scmp.ne.s32.totalorder %s94, %s96
      %p100 = scmp.eq.s32.totalorder %s18, 0
      %p101 = por %p99, %p100
      %p102 = scmp.ne.s32.totalorder %s94, %s96
      %p103 = scmp.eq.s32.totalorder %s23, 1
      %p104 = por %p102, %p103
      %p105 = scmp.ne.s32.totalorder %s96, %s97
      %p106 = scmp.eq.s32.totalorder %s23, 0
      %p107 = por %p105, %p106
      %p108 = scmp.ne.s32.totalorder %s96, %s97
      %p109 = scmp.eq.s32.totalorder %s24, 1
      %p110 = por %p108, %p109
      %p112 = scmp.ne.s32.totalorder %s97, %s111
      %p113 = scmp.eq.s32.totalorder %s24, 0
      %p114 = por %p112, %p113
      %s116 = sadd.s32 %s115, 1
      %p119 = scmp.eq.s32.totalorder %s18, 1
      %p120 = scmp.ne.s32.totalorder %s115, %s117
      %p121 = scmp.eq.s32.totalorder %s18, 0
      %p122 = por %p120, %p121
      %p123 = scmp.ne.s32.totalorder %s115, %s117
      %p124 = scmp.eq.s32.totalorder %s23, 1
      %p125 = por %p123, %p124
      %p126 = scmp.ne.s32.totalorder %s117, %s118
      %p127 = scmp.eq.s32.totalorder %s23, 0
      %p128 = por %p126, %p127
      %p129 = scmp.ne.s32.totalorder %s117, %s118
      %p130 = scmp.eq.s32.totalorder %s24, 1
      %p131 = por %p129, %p130
      %p133 = scmp.ne.s32.totalorder %s118, %s132
      %p134 = scmp.eq.s32.totalorder %s24, 0
      %p135 = por %p133, %p134
      %s137 = sadd.s32 %s136, 1
      %p140 = scmp.eq.s32.totalorder %s18, 1
      %p141 = scmp.ne.s32.totalorder %s136, %s138
      %p142 = scmp.eq.s32.totalorder %s18, 0
      %p143 = por %p141, %p142
      %p144 = scmp.ne.s32.totalorder %s136, %s138
      %p145 = scmp.eq.s32.totalorder %s23, 1
      %p146 = por %p144, %p145
      %p147 = scmp.ne.s32.totalorder %s138, %s139
      %p148 = scmp.eq.s32.totalorder %s23, 0
      %p149 = por %p147, %p148
      %p150 = scmp.ne.s32.totalorder %s138, %s139
      %p151 = scmp.eq.s32.totalorder %s24, 1
      %p152 = por %p150, %p151
      %p154 = scmp.ne.s32.totalorder %s139, %s153
      %p155 = scmp.eq.s32.totalorder %s24, 0
      %p156 = por %p154, %p155
      %s158 = sadd.s32 %s157, 1
      %p161 = scmp.eq.s32.totalorder %s18, 1
      %p162 = scmp.ne.s32.totalorder %s157, %s159
      %p163 = scmp.eq.s32.totalorder %s18, 0
      %p164 = por %p162, %p163
      %p165 = scmp.ne.s32.totalorder %s157, %s159
      %p166 = scmp.eq.s32.totalorder %s23, 1
      %p167 = por %p165, %p166
      %p168 = scmp.ne.s32.totalorder %s159, %s160
      %p169 = scmp.eq.s32.totalorder %s23, 0
      %p170 = por %p168, %p169
      %p171 = scmp.ne.s32.totalorder %s159, %s160
      %p172 = scmp.eq.s32.totalorder %s24, 1
      %p173 = por %p171, %p172
      %p175 = scmp.ne.s32.totalorder %s160, %s174
      %p176 = scmp.eq.s32.totalorder %s24, 0
      %p177 = por %p175, %p176
      %s179 = sadd.s32 %s178, 1
      %p182 = scmp.eq.s32.totalorder %s18, 1
      %p183 = scmp.ne.s32.totalorder %s178, %s180
      %p184 = scmp.eq.s32.totalorder %s18, 0
      %p185 = por %p183, %p184
      %p186 = scmp.ne.s32.totalorder %s178, %s180
      %p187 = scmp.eq.s32.totalorder %s23, 1
      %p188 = por %p186, %p187
      %p189 = scmp.ne.s32.totalorder %s180, %s181
      %p190 = scmp.eq.s32.totalorder %s23, 0
      %p191 = por %p189, %p190
      %p192 = scmp.ne.s32.totalorder %s180, %s181
      %p193 = scmp.eq.s32.totalorder %s24, 1
      %p194 = por %p192, %p193
      %p196 = scmp.ne.s32.totalorder %s181, %s195
      %p197 = scmp.eq.s32.totalorder %s24, 0
      %p198 = por %p196, %p197
      %s200 = sadd.s32 %s199, 1
      %p203 = scmp.eq.s32.totalorder %s18, 1
      %p204 = scmp.ne.s32.totalorder %s199, %s201
      %p205 = scmp.eq.s32.totalorder %s18, 0
      %p206 = por %p204, %p205
      %p207 = scmp.ne.s32.totalorder %s199, %s201
      %p208 = scmp.eq.s32.totalorder %s23, 1
      %p209 = por %p207, %p208
      %p210 = scmp.ne.s32.totalorder %s201, %s202
      %p211 = scmp.eq.s32.totalorder %s23, 0
      %p212 = por %p210, %p211
      %p213 = scmp.ne.s32.totalorder %s201, %s202
      %p214 = scmp.eq.s32.totalorder %s24, 1
      %p215 = por %p213, %p214
      %p217 = scmp.ne.s32.totalorder %s202, %s216
      %p218 = scmp.eq.s32.totalorder %s24, 0
      %p219 = por %p217, %p218
      %s220 = ssub.s32 %s18, %s25
      %p221 = scmp.eq.s32.totalorder %s220, 0
      %s223 = sadd.s32 %s222, 1
      %s224 = scalar_select %p221, %s222, %s223
      %p227 = pneg %p221
      %p228 = scmp.eq.s32.totalorder %s18, 1
      %p229 = por %p227, %p228
      %p230 = scmp.ne.s32.totalorder %s222, %s225
      %p231 = scmp.eq.s32.totalorder %s18, 0
      %p232 = por %p230, %p231
      %p233 = scmp.ne.s32.totalorder %s222, %s225
      %p234 = scmp.eq.s32.totalorder %s23, 1
      %p235 = por %p233, %p234
      %p236 = scmp.ne.s32.totalorder %s225, %s226
      %p237 = scmp.eq.s32.totalorder %s23, 0
      %p238 = por %p236, %p237
      %p239 = scmp.ne.s32.totalorder %s225, %s226
      %p240 = scmp.eq.s32.totalorder %s24, 1
      %p241 = por %p239, %p240
      %p243 = scmp.ne.s32.totalorder %s226, %s242
      %p244 = scmp.eq.s32.totalorder %s24, 0
      %p245 = por %p243, %p244
      %p246 = scmp.le.s32.totalorder 1, %s18
      %p247 = scmp.lt.s32.totalorder %s18, 3
      %p248 = pnand %p246, %p247
      %p249 = pneg %p248
      // Predicated region
      $region9: #{tpu_custom_call.1} parent=5 // pred_check
        _
      $region10: #{tpu_custom_call.1} parent=5 // pred_check_branch
        %251 = sbr.rel (%p248) target = $region12
      $region11: #{tpu_custom_call.1} parent=5 // pred_region
        %s252 = ssub.s32 %s18, 1
        // Predicated region
        $region13: #{tpu_custom_call.1} parent=11 // pred_check
          %p253 = pneg %p65
        $region14: #{tpu_custom_call.1} parent=11 // pred_check_branch
          %255 = sbr.rel (%p253) target = $region16
        $region15: #{tpu_custom_call.1} parent=11 // pred_region
          _
        $region16: #{tpu_custom_call.1} parent=11 // pred_fallthru
          _
        // Predicated region
        $region17: #{tpu_custom_call.1} parent=11 // pred_check
          %p256 = pneg %p86
        $region18: #{tpu_custom_call.1} parent=11 // pred_check_branch
          %258 = sbr.rel (%p256) target = $region20
        $region19: #{tpu_custom_call.1} parent=11 // pred_region
          _
        $region20: #{tpu_custom_call.1} parent=11 // pred_fallthru
          _
        // Predicated region
        $region21: #{tpu_custom_call.1} parent=11 // pred_check
          %p259 = pneg %p107
        $region22: #{tpu_custom_call.1} parent=11 // pred_check_branch
          %261 = sbr.rel (%p259) target = $region24
        $region23: #{tpu_custom_call.1} parent=11 // pred_region
          _
        $region24: #{tpu_custom_call.1} parent=11 // pred_fallthru
          _
        // Predicated region
        $region25: #{tpu_custom_call.1} parent=11 // pred_check
          %p262 = pneg %p128
        $region26: #{tpu_custom_call.1} parent=11 // pred_check_branch
          %264 = sbr.rel (%p262) target = $region28
        $region27: #{tpu_custom_call.1} parent=11 // pred_region
          _
        $region28: #{tpu_custom_call.1} parent=11 // pred_fallthru
          _
        // Predicated region
        $region29: #{tpu_custom_call.1} parent=11 // pred_check
          %p265 = pneg %p149
        $region30: #{tpu_custom_call.1} parent=11 // pred_check_branch
          %267 = sbr.rel (%p265) target = $region32
        $region31: #{tpu_custom_call.1} parent=11 // pred_region
          _
        $region32: #{tpu_custom_call.1} parent=11 // pred_fallthru
          _
        // Predicated region
        $region33: #{tpu_custom_call.1} parent=11 // pred_check
          %p268 = pneg %p170
        $region34: #{tpu_custom_call.1} parent=11 // pred_check_branch
          %270 = sbr.rel (%p268) target = $region36
        $region35: #{tpu_custom_call.1} parent=11 // pred_region
          _
        $region36: #{tpu_custom_call.1} parent=11 // pred_fallthru
          _
        // Predicated region
        $region37: #{tpu_custom_call.1} parent=11 // pred_check
          %p271 = pneg %p191
        $region38: #{tpu_custom_call.1} parent=11 // pred_check_branch
          %273 = sbr.rel (%p271) target = $region40
        $region39: #{tpu_custom_call.1} parent=11 // pred_region
          _
        $region40: #{tpu_custom_call.1} parent=11 // pred_fallthru
          _
        // Predicated region
        $region41: #{tpu_custom_call.1} parent=11 // pred_check
          %p274 = pneg %p212
        $region42: #{tpu_custom_call.1} parent=11 // pred_check_branch
          %276 = sbr.rel (%p274) target = $region44
        $region43: #{tpu_custom_call.1} parent=11 // pred_region
          _
        $region44: #{tpu_custom_call.1} parent=11 // pred_fallthru
          _
      $region12: #{tpu_custom_call.1} parent=5 // pred_fallthru
        _
      %p277 = scmp.lt.s32.totalorder %s18, 2
      // Predicated region
      $region45: #{tpu_custom_call.1} parent=5 // pred_check
        %p278 = pneg %p277
      $region46: #{tpu_custom_call.1} parent=5 // pred_check_branch
        %280 = sbr.rel (%p278) target = $region48
      $region47: #{tpu_custom_call.1} parent=5 // pred_region
        // Predicated region
        $region49: #{tpu_custom_call.1} parent=47 // pred_check
          %p281 = pneg %p38
        $region50: #{tpu_custom_call.1} parent=47 // pred_check_branch
          %283 = sbr.rel (%p281) target = $region52
        $region51: #{tpu_custom_call.1} parent=47 // pred_region
          %p284 = scmp.lt.s32.totalorder %s18, 1
          %s285 = scalar_select %p284, %s18, 1
          %s286 = smul.addr %s285, 8
          %s287 = scalar_lea.vmem %s0, %s286
        $region52: #{tpu_custom_call.1} parent=47 // pred_fallthru
          _
      $region48: #{tpu_custom_call.1} parent=5 // pred_fallthru
        _
      %p288 = scmp.le.s32.totalorder 1, %s18
      %p289 = scmp.lt.s32.totalorder %s18, 3
      %p290 = pnand %p288, %p289
      %p291 = pneg %p290
      // Predicated region
      $region53: #{tpu_custom_call.1} parent=5 // pred_check
        _
      $region54: #{tpu_custom_call.1} parent=5 // pred_check_branch
        %293 = sbr.rel (%p290) target = $region56
      $region55: #{tpu_custom_call.1} parent=5 // pred_region
        %s294 = ssub.s32 %s18, 1
        %p295 = scmp.lt.s32.totalorder %s23, 1
        %s296 = scalar_select %p295, %s23, 1
        %s297 = smul.addr %s296, 8
        %s298 = scalar_lea.vmem %s0, %s297
        %p299 = pneg %p44
        %p300 = pneg %p41
        %p301 = pneg %p65
        %p302 = pneg %p62
        %p303 = pneg %p86
        %p304 = pneg %p83
        %p305 = pneg %p107
        %p306 = pneg %p104
        %p307 = pneg %p128
        %p308 = pneg %p125
        %p309 = pneg %p149
        %p310 = pneg %p146
        %p311 = pneg %p170
        %p312 = pneg %p167
        %p313 = pneg %p191
        %p314 = pneg %p188
        %p315 = pneg %p212
        %p316 = pneg %p209
        %p317 = pneg %p238
        %p318 = pneg %p235
        %s319 = sand.u32 %s225, 1
        %s320 = scalar_lea.sflag [#allocation3], %s319
        %s321 = sand.u32 %s225, 1
        %s322 = smul.addr %s321, 8
        %s323 = scalar_lea.vmem [#allocation2], %s322
        %p324 = scmp.lt.s32.totalorder %s23, 1
        %s325 = scalar_select %p324, %s23, 1
        %s326 = smul.addr %s325, 8
        %s327 = scalar_lea.vmem %s0, %s326
        %v328 = vld [vmem:[%s327] sm:$0xff]
        %v329 = vld [vmem:[%s1] sm:$0xff]
        %v330 = vld [vmem:[%s1 + $0x8] sm:$0xff]
        %v331 = vld [vmem:[%s1 + $0x10] sm:$0xff]
        %v332 = vld [vmem:[%s1 + $0x18] sm:$0xff]
        %v333 = vld [vmem:[%s4] sm:$0x1]
        %v335 = vlaneseq
        %v336 = vshrl.u32 %v335, 7
        %v337 = vsub.s32 0, %v336
        %v338 = vrot.slane %v333, %v337
        %vm340 = vcmask 261120
        %v342 = vsel %vm340, %v328, 0
        %344 = vmatprep.subr.mxu0 0.0
        %345 = vmatpush1.msra.mxu0 %v329
        %346 = vmatprep.subr.mxu0 0.0
        %347 = vmatpush1.msra.mxu0 %v330
        %348 = vmatprep.subr.mxu0 0.0
        %349 = vmatpush1.msra.mxu0 %v331
        %350 = vmatprep.subr.mxu0 0.0
        %351 = vmatpush1.msra.mxu0 %v332
        %352 = vmatprep.subr.mxu0 0.0
        %353 = vmatpush1.msra.mxu0 0.0
        %354 = vmatprep.subr.mxu0 0.0
        %355 = vmatpush1.msra.mxu0 0.0
        %356 = vmatprep.subr.mxu0 0.0
        %357 = vmatpush1.msra.mxu0 0.0
        %358 = vmatprep.subr.mxu0 0.0
        %359 = vmatpush1.msra.mxu0 0.0
        %360 = vmatprep.subr.mxu0 0.0
        %361 = vmatpush1.msra.mxu0 0.0
        %362 = vmatprep.subr.mxu0 0.0
        %363 = vmatpush1.msra.mxu0 0.0
        %364 = vmatprep.subr.mxu0 0.0
        %365 = vmatpush1.msra.mxu0 0.0
        %366 = vmatprep.subr.mxu0 0.0
        %367 = vmatpush1.msra.mxu0 0.0
        %368 = vmatprep.subr.mxu0 0.0
        %369 = vmatpush1.msra.mxu0 0.0
        %370 = vmatprep.subr.mxu0 0.0
        %371 = vmatpush1.msra.mxu0 0.0
        %372 = vmatprep.subr.mxu0 0.0
        %373 = vmatpush1.msra.mxu0 0.0
        %374 = vmatprep.subr.mxu0 0.0
        %375 = vmatpush1.msra.mxu0 0.0
        %376 = vmatprep.subr.mxu0 0.0
        %377 = vmatpush1.msra.mxu0 0.0
        %378 = vmatprep.subr.mxu0 0.0
        %379 = vmatpush1.msra.mxu0 0.0
        %380 = vmatprep.subr.mxu0 0.0
        %381 = vmatpush1.msra.mxu0 0.0
        %382 = vmatprep.subr.mxu0 0.0
        %383 = vmatpush1.msra.mxu0 0.0
        %384 = vmatprep.subr.mxu0 0.0
        %385 = vmatpush1.msra.mxu0 0.0
        %386 = vmatprep.subr.mxu0 0.0
        %387 = vmatpush1.msra.mxu0 0.0
        %388 = vmatprep.subr.mxu0 0.0
        %389 = vmatpush1.msra.mxu0 0.0
        %390 = vmatprep.subr.mxu0 0.0
        %391 = vmatpush1.msra.mxu0 0.0
        %392 = vmatprep.subr.mxu0 0.0
        %393 = vmatpush1.msra.mxu0 0.0
        %394 = vmatprep.subr.mxu0 0.0
        %395 = vmatpush1.msra.mxu0 0.0
        %396 = vmatprep.subr.mxu0 0.0
        %397 = vmatpush1.msra.mxu0 0.0
        %398 = vmatprep.subr.mxu0 0.0
        %399 = vmatpush1.msra.mxu0 0.0
        %400 = vmatprep.subr.mxu0 0.0
        %401 = vmatpush1.msra.mxu0 0.0
        %402 = vmatprep.subr.mxu0 0.0
        %403 = vmatpush1.msra.mxu0 0.0
        %404 = vmatprep.subr.mxu0 0.0
        %405 = vmatpush1.msra.mxu0 0.0
        %406 = vmatprep.subr.mxu0 0.0
        %407 = vmatpush1.msra.mxu0 0.0
        %408 = vmatprep.mubr.f32.mxu0 0.0
        %409 = vmatmul.mubr.f32.gmra.mrb[0].mxu0 %v342
        %v410 = vpop.f32.mrb[0].mxu0
        %v411 = vadd.f32 %v338, %v410
        %v412 = vpop.f32.mrb[0].mxu0
        %413 = vdwg.mxu0
        %v414 = vmax.f32 %v411, 0.0
        %v415 = vld [vmem:[%s2] sm:$0xff]
        %v416 = vld [vmem:[%s2 + $0x8] sm:$0xff]
        %v417 = vld [vmem:[%s2 + $0x10] sm:$0xff]
        %v418 = vld [vmem:[%s2 + $0x18] sm:$0xff]
        %v419 = vld [vmem:[%s5] sm:$0x1]
        %v421 = vlaneseq
        %v422 = vshrl.u32 %v421, 7
        %v423 = vsub.s32 0, %v422
        %v424 = vrot.slane %v419, %v423
        %v427 = vsel %vm340, %v414, 0
        %429 = vmatprep.subr.mxu0 0.0
        %430 = vmatpush1.msra.mxu0 %v415
        %431 = vmatprep.subr.mxu0 0.0
        %432 = vmatpush1.msra.mxu0 %v416
        %433 = vmatprep.subr.mxu0 0.0
        %434 = vmatpush1.msra.mxu0 %v417
        %435 = vmatprep.subr.mxu0 0.0
        %436 = vmatpush1.msra.mxu0 %v418
        %437 = vmatprep.subr.mxu0 0.0
        %438 = vmatpush1.msra.mxu0 0.0
        %439 = vmatprep.subr.mxu0 0.0
        %440 = vmatpush1.msra.mxu0 0.0
        %441 = vmatprep.subr.mxu0 0.0
        %442 = vmatpush1.msra.mxu0 0.0
        %443 = vmatprep.subr.mxu0 0.0
        %444 = vmatpush1.msra.mxu0 0.0
        %445 = vmatprep.subr.mxu0 0.0
        %446 = vmatpush1.msra.mxu0 0.0
        %447 = vmatprep.subr.mxu0 0.0
        %448 = vmatpush1.msra.mxu0 0.0
        %449 = vmatprep.subr.mxu0 0.0
        %450 = vmatpush1.msra.mxu0 0.0
        %451 = vmatprep.subr.mxu0 0.0
        %452 = vmatpush1.msra.mxu0 0.0
        %453 = vmatprep.subr.mxu0 0.0
        %454 = vmatpush1.msra.mxu0 0.0
        %455 = vmatprep.subr.mxu0 0.0
        %456 = vmatpush1.msra.mxu0 0.0
        %457 = vmatprep.subr.mxu0 0.0
        %458 = vmatpush1.msra.mxu0 0.0
        %459 = vmatprep.subr.mxu0 0.0
        %460 = vmatpush1.msra.mxu0 0.0
        %461 = vmatprep.subr.mxu0 0.0
        %462 = vmatpush1.msra.mxu0 0.0
        %463 = vmatprep.subr.mxu0 0.0
        %464 = vmatpush1.msra.mxu0 0.0
        %465 = vmatprep.subr.mxu0 0.0
        %466 = vmatpush1.msra.mxu0 0.0
        %467 = vmatprep.subr.mxu0 0.0
        %468 = vmatpush1.msra.mxu0 0.0
        %469 = vmatprep.subr.mxu0 0.0
        %470 = vmatpush1.msra.mxu0 0.0
        %471 = vmatprep.subr.mxu0 0.0
        %472 = vmatpush1.msra.mxu0 0.0
        %473 = vmatprep.subr.mxu0 0.0
        %474 = vmatpush1.msra.mxu0 0.0
        %475 = vmatprep.subr.mxu0 0.0
        %476 = vmatpush1.msra.mxu0 0.0
        %477 = vmatprep.subr.mxu0 0.0
        %478 = vmatpush1.msra.mxu0 0.0
        %479 = vmatprep.subr.mxu0 0.0
        %480 = vmatpush1.msra.mxu0 0.0
        %481 = vmatprep.subr.mxu0 0.0
        %482 = vmatpush1.msra.mxu0 0.0
        %483 = vmatprep.subr.mxu0 0.0
        %484 = vmatpush1.msra.mxu0 0.0
        %485 = vmatprep.subr.mxu0 0.0
        %486 = vmatpush1.msra.mxu0 0.0
        %487 = vmatprep.subr.mxu0 0.0
        %488 = vmatpush1.msra.mxu0 0.0
        %489 = vmatprep.subr.mxu0 0.0
        %490 = vmatpush1.msra.mxu0 0.0
        %491 = vmatprep.subr.mxu0 0.0
        %492 = vmatpush1.msra.mxu0 0.0
        %493 = vmatprep.mubr.f32.mxu0 0.0
        %494 = vmatmul.mubr.f32.gmra.mrb[0].mxu0 %v427
        %v495 = vpop.f32.mrb[0].mxu0
        %v496 = vadd.f32 %v424, %v495
        %v497 = vpop.f32.mrb[0].mxu0
        %498 = vdwg.mxu0
        %v499 = vmax.f32 %v496, 0.0
        %501 = vrot.lane.b32.xlu0 %v499, 32
        %v502 = vpop.permute.xlu0 %501
        %v504 = vadd.f32 %v414, %v502
        %v505 = vld [vmem:[%s3] sm:$0xff]
        %v506 = vld [vmem:[%s3 + $0x8] sm:$0xff]
        %v507 = vld [vmem:[%s3 + $0x10] sm:$0xff]
        %v508 = vld [vmem:[%s3 + $0x18] sm:$0xff]
        %v509 = vld [vmem:[%s6] sm:$0x1]
        %v511 = vlaneseq
        %v512 = vshrl.u32 %v511, 7
        %v513 = vsub.s32 0, %v512
        %v514 = vrot.slane %v509, %v513
        %517 = vrot.lane.b32.xlu0 %v504, 96
        %v518 = vpop.permute.xlu0 %517
        %v519 = vsel %vm340, %v518, 0
        %521 = vmatprep.subr.mxu0 0.0
        %522 = vmatpush1.msra.mxu0 %v505
        %523 = vmatprep.subr.mxu0 0.0
        %524 = vmatpush1.msra.mxu0 %v506
        %525 = vmatprep.subr.mxu0 0.0
        %526 = vmatpush1.msra.mxu0 %v507
        %527 = vmatprep.subr.mxu0 0.0
        %528 = vmatpush1.msra.mxu0 %v508
        %529 = vmatprep.subr.mxu0 0.0
        %530 = vmatpush1.msra.mxu0 0.0
        %531 = vmatprep.subr.mxu0 0.0
        %532 = vmatpush1.msra.mxu0 0.0
        %533 = vmatprep.subr.mxu0 0.0
        %534 = vmatpush1.msra.mxu0 0.0
        %535 = vmatprep.subr.mxu0 0.0
        %536 = vmatpush1.msra.mxu0 0.0
        %537 = vmatprep.subr.mxu0 0.0
        %538 = vmatpush1.msra.mxu0 0.0
        %539 = vmatprep.subr.mxu0 0.0
        %540 = vmatpush1.msra.mxu0 0.0
        %541 = vmatprep.subr.mxu0 0.0
        %542 = vmatpush1.msra.mxu0 0.0
        %543 = vmatprep.subr.mxu0 0.0
        %544 = vmatpush1.msra.mxu0 0.0
        %545 = vmatprep.subr.mxu0 0.0
        %546 = vmatpush1.msra.mxu0 0.0
        %547 = vmatprep.subr.mxu0 0.0
        %548 = vmatpush1.msra.mxu0 0.0
        %549 = vmatprep.subr.mxu0 0.0
        %550 = vmatpush1.msra.mxu0 0.0
        %551 = vmatprep.subr.mxu0 0.0
        %552 = vmatpush1.msra.mxu0 0.0
        %553 = vmatprep.subr.mxu0 0.0
        %554 = vmatpush1.msra.mxu0 0.0
        %555 = vmatprep.subr.mxu0 0.0
        %556 = vmatpush1.msra.mxu0 0.0
        %557 = vmatprep.subr.mxu0 0.0
        %558 = vmatpush1.msra.mxu0 0.0
        %559 = vmatprep.subr.mxu0 0.0
        %560 = vmatpush1.msra.mxu0 0.0
        %561 = vmatprep.subr.mxu0 0.0
        %562 = vmatpush1.msra.mxu0 0.0
        %563 = vmatprep.subr.mxu0 0.0
        %564 = vmatpush1.msra.mxu0 0.0
        %565 = vmatprep.subr.mxu0 0.0
        %566 = vmatpush1.msra.mxu0 0.0
        %567 = vmatprep.subr.mxu0 0.0
        %568 = vmatpush1.msra.mxu0 0.0
        %569 = vmatprep.subr.mxu0 0.0
        %570 = vmatpush1.msra.mxu0 0.0
        %571 = vmatprep.subr.mxu0 0.0
        %572 = vmatpush1.msra.mxu0 0.0
        %573 = vmatprep.subr.mxu0 0.0
        %574 = vmatpush1.msra.mxu0 0.0
        %575 = vmatprep.subr.mxu0 0.0
        %576 = vmatpush1.msra.mxu0 0.0
        %577 = vmatprep.subr.mxu0 0.0
        %578 = vmatpush1.msra.mxu0 0.0
        %579 = vmatprep.subr.mxu0 0.0
        %580 = vmatpush1.msra.mxu0 0.0
        %581 = vmatprep.subr.mxu0 0.0
        %582 = vmatpush1.msra.mxu0 0.0
        %583 = vmatprep.subr.mxu0 0.0
        %584 = vmatpush1.msra.mxu0 0.0
        %585 = vmatprep.mubr.f32.mxu0 0.0
        %586 = vmatmul.mubr.f32.gmra.mrb[0].mxu0 %v519
        %v587 = vpop.f32.mrb[0].mxu0
        %v588 = vadd.f32 %v514, %v587
        %v589 = vpop.f32.mrb[0].mxu0
        %590 = vdwg.mxu0
        %v591 = vmax.f32 %v588, 0.0
        %593 = vrot.lane.b32.xlu0 %v591, 64
        %v594 = vpop.permute.xlu0 %593
        %v596 = vadd.f32 %v504, %v594
        %v597 = vsel %vm340, %v414, %v504
        %vm598 = vcmask 523264
        %v599 = vsel %vm598, %v597, %v596
        %v600 = vld [vmem:[%s7] sm:$0xff]
        %v601 = vld [vmem:[%s7 + $0x8] sm:$0xff]
        %v602 = vld [vmem:[%s7 + $0x10] sm:$0xff]
        %v603 = vld [vmem:[%s7 + $0x18] sm:$0xff]
        %v604 = vld [vmem:[%s7 + $0x20] sm:$0xff]
        %v605 = vld [vmem:[%s7 + $0x28] sm:$0xff]
        %v606 = vld [vmem:[%s7 + $0x30] sm:$0xff]
        %v607 = vld [vmem:[%s7 + $0x38] sm:$0xff]
        %v608 = vld [vmem:[%s7 + $0x40] sm:$0xff]
        %v609 = vld [vmem:[%s7 + $0x48] sm:$0xff]
        %v610 = vld [vmem:[%s7 + $0x50] sm:$0xff]
        %v611 = vld [vmem:[%s7 + $0x58] sm:$0xff]
        %v612 = vld [vmem:[%s8] sm:$0x1]
        %v614 = vlaneseq
        %v615 = vshrl.u32 %v614, 7
        %v616 = vsub.s32 0, %v615
        %v617 = vrot.slane %v612, %v616
        %vm619 = vcmask 785408
        %v621 = vsel %vm619, %v599, 0
        %623 = vmatprep.subr.mxu0 0.0
        %624 = vmatpush1.msra.mxu0 %v600
        %625 = vmatprep.subr.mxu0 0.0
        %626 = vmatpush1.msra.mxu0 %v601
        %627 = vmatprep.subr.mxu0 0.0
        %628 = vmatpush1.msra.mxu0 %v602
        %629 = vmatprep.subr.mxu0 0.0
        %630 = vmatpush1.msra.mxu0 %v603
        %631 = vmatprep.subr.mxu0 0.0
        %632 = vmatpush1.msra.mxu0 %v604
        %633 = vmatprep.subr.mxu0 0.0
        %634 = vmatpush1.msra.mxu0 %v605
        %635 = vmatprep.subr.mxu0 0.0
        %636 = vmatpush1.msra.mxu0 %v606
        %637 = vmatprep.subr.mxu0 0.0
        %638 = vmatpush1.msra.mxu0 %v607
        %639 = vmatprep.subr.mxu0 0.0
        %640 = vmatpush1.msra.mxu0 %v608
        %641 = vmatprep.subr.mxu0 0.0
        %642 = vmatpush1.msra.mxu0 %v609
        %643 = vmatprep.subr.mxu0 0.0
        %644 = vmatpush1.msra.mxu0 %v610
        %645 = vmatprep.subr.mxu0 0.0
        %646 = vmatpush1.msra.mxu0 %v611
        %647 = vmatprep.subr.mxu0 0.0
        %648 = vmatpush1.msra.mxu0 0.0
        %649 = vmatprep.subr.mxu0 0.0
        %650 = vmatpush1.msra.mxu0 0.0
        %651 = vmatprep.subr.mxu0 0.0
        %652 = vmatpush1.msra.mxu0 0.0
        %653 = vmatprep.subr.mxu0 0.0
        %654 = vmatpush1.msra.mxu0 0.0
        %655 = vmatprep.subr.mxu0 0.0
        %656 = vmatpush1.msra.mxu0 0.0
        %657 = vmatprep.subr.mxu0 0.0
        %658 = vmatpush1.msra.mxu0 0.0
        %659 = vmatprep.subr.mxu0 0.0
        %660 = vmatpush1.msra.mxu0 0.0
        %661 = vmatprep.subr.mxu0 0.0
        %662 = vmatpush1.msra.mxu0 0.0
        %663 = vmatprep.subr.mxu0 0.0
        %664 = vmatpush1.msra.mxu0 0.0
        %665 = vmatprep.subr.mxu0 0.0
        %666 = vmatpush1.msra.mxu0 0.0
        %667 = vmatprep.subr.mxu0 0.0
        %668 = vmatpush1.msra.mxu0 0.0
        %669 = vmatprep.subr.mxu0 0.0
        %670 = vmatpush1.msra.mxu0 0.0
        %671 = vmatprep.subr.mxu0 0.0
        %672 = vmatpush1.msra.mxu0 0.0
        %673 = vmatprep.subr.mxu0 0.0
        %674 = vmatpush1.msra.mxu0 0.0
        %675 = vmatprep.subr.mxu0 0.0
        %676 = vmatpush1.msra.mxu0 0.0
        %677 = vmatprep.subr.mxu0 0.0
        %678 = vmatpush1.msra.mxu0 0.0
        %679 = vmatprep.subr.mxu0 0.0
        %680 = vmatpush1.msra.mxu0 0.0
        %681 = vmatprep.subr.mxu0 0.0
        %682 = vmatpush1.msra.mxu0 0.0
        %683 = vmatprep.subr.mxu0 0.0
        %684 = vmatpush1.msra.mxu0 0.0
        %685 = vmatprep.subr.mxu0 0.0
        %686 = vmatpush1.msra.mxu0 0.0
        %687 = vmatprep.mubr.f32.mxu0 0.0
        %688 = vmatmul.mubr.f32.gmra.mrb[0].mxu0 %v621
        %v689 = vpop.f32.mrb[0].mxu0
        %v690 = vadd.f32 %v617, %v689
        %v691 = vpop.f32.mrb[0].mxu0
        %692 = vdwg.mxu0
        %693 = vst.msk [vmem:[%s323] sm:$0xff] %vm340, %v690
        %s694 = sand.u32 %s225, 1
        %s695 = scalar_lea.sflag [#allocation3], %s694
        %s696 = sand.u32 %s225, 1
        %s697 = smul.addr %s696, 8
        %s698 = scalar_lea.vmem [#allocation2], %s697
        // Predicated region
        $region57: #{tpu_custom_call.1} parent=55 // pred_check
          %p699 = pneg %p235
        $region58: #{tpu_custom_call.1} parent=55 // pred_check_branch
          %701 = sbr.rel (%p699) target = $region60
        $region59: #{tpu_custom_call.1} parent=55 // pred_region
          %s703 = ssub.s32 128, 128
          %704 = vsyncadd %s695, %s703
          %s705 = smul.addr %s23, 128
          %s706 = scalar_lea.hbm %s9, %s705
          %s708 = sshll.u32 %s698, 4
          %s709 = int_to_ptr.vmem [resolvable:$true] %s708
          %711 = dma.vmem_to_hbm [thread:$0]  %s709, 128, %s706, %s695
        $region60: #{tpu_custom_call.1} parent=55 // pred_fallthru
          _
      $region56: #{tpu_custom_call.1} parent=5 // pred_fallthru
        _
      %p712 = scmp.le.s32.totalorder 2, %s18
      // Predicated region
      $region61: #{tpu_custom_call.1} parent=5 // pred_check
        %p713 = pneg %p712
      $region62: #{tpu_custom_call.1} parent=5 // pred_check_branch
        %715 = sbr.rel (%p713) target = $region64
      $region63: #{tpu_custom_call.1} parent=5 // pred_region
        %s716 = ssub.s32 %s18, 2
        // Predicated region
        $region65: #{tpu_custom_call.1} parent=63 // pred_check
          %p717 = pneg %p241
        $region66: #{tpu_custom_call.1} parent=63 // pred_check_branch
          %719 = sbr.rel (%p717) target = $region68
        $region67: #{tpu_custom_call.1} parent=63 // pred_region
          %s720 = sand.u32 %s226, 1
          %s721 = scalar_lea.sflag [#allocation3], %s720
          %s722 = sand.u32 %s226, 1
          %s723 = smul.addr %s722, 8
          %s724 = scalar_lea.vmem [#allocation2], %s723
          %725 = dma.done %s721, 128
        $region68: #{tpu_custom_call.1} parent=63 // pred_fallthru
          _
      $region64: #{tpu_custom_call.1} parent=5 // pred_fallthru
        _
    $region6: #{tpu_custom_call.1} parent=1 // loop_footer
      %s22 = sadd.s32 1, %s18
    $region7: #{tpu_custom_call.1} parent=1 // loop_footer_branch
      %17 = sbr.rel target = $region3
    $region8: #{tpu_custom_call.1} parent=1 // loop_exit
      _
    %726 = vsyncpa [#allocation3], 1
    %s727 = scalar_lea.sflag [#allocation3], 1
    %728 = vsyncpa %s727, 1

</llo_original>
